<compile_context>
chip_gen: v6e
topology: v6e:2x2x1
jax: 0.10.0
libtpu: 0.0.40
codegen_flags: <defaults>
</compile_context>

<pallas_src>
import functools

import jax
import jax.numpy as jnp
from jax.experimental import pallas as pl
from jax.experimental.pallas import tpu as pltpu

_LANE = 128
_SUBLANE = 8


def _round_up(x, m):
    return (x + m - 1) // m * m


# ----------------------------- kernels --------------------------------------


def _excite(pooled_f32, w1, w2):
    """FC -> ReLU -> FC -> sigmoid on an (n, C) f32 pooled tensor.

    Weights stay in their native dtype (bf16 weights keep the MXU at bf16
    rate); accumulation is forced to f32 via preferred_element_type.
    """
    h = jnp.dot(pooled_f32.astype(w1.dtype), w1,
                preferred_element_type=jnp.float32)
    h = jnp.maximum(h, 0.0)
    s = jnp.dot(h.astype(w2.dtype), w2, preferred_element_type=jnp.float32)
    return jax.nn.sigmoid(s)


def _se_fused_kernel(x_ref, w1_ref, w2_ref, o_ref, *, inv_hw):
    # x block: (tb, C, HW); HW on the lane axis, C on sublanes.
    x = x_ref[...]
    # Squeeze: cross-lane sum with f32 accumulate, * (1/HW) instead of divide.
    pooled = jnp.sum(x, axis=-1, dtype=jnp.float32) * inv_hw          # (tb, C)
    s = _excite(pooled, w1_ref[...], w2_ref[...])                     # (tb, C)
    # Scale: broadcast the per-(batch, channel) gate over the spatial lanes,
    # staying in the input dtype for the big elementwise path.
    o_ref[...] = x * s[:, :, None].astype(x.dtype)


def _pool_kernel(x_ref, p_ref, *, inv_hw):
    # x block: (1, tc, HW) -> pooled block (1, tc, 1) f32.
    p_ref[...] = (jnp.sum(x_ref[...], axis=-1, keepdims=True,
                          dtype=jnp.float32) * inv_hw)


def _gate_kernel(p_ref, w1_ref, w2_ref, s_ref):
    # p block: (tbg, C, 1) f32 -> gate block (tbg, C, 1) f32.
    pooled = p_ref[...][:, :, 0]                                      # (tbg, C)
    s = _excite(pooled, w1_ref[...], w2_ref[...])
    s_ref[...] = s[:, :, None]


def _scale_kernel(x_ref, s_ref, o_ref):
    # x block: (1, tc, HW); s block: (1, tc, 1) f32.
    x = x_ref[...]
    o_ref[...] = x * s_ref[...].astype(x.dtype)


# ----------------------------- tiling ----------------------------------------


def _vmem_limit_bytes():
    """Scoped-VMEM limit: ~3/4 of physical VMEM (128 MiB v5e/v6e, 64 MiB v7x)."""
    cap = None
    try:
        cap = int(pltpu.get_tpu_info().vmem_capacity_bytes)
    except Exception:
        cap = None
    if not cap:
        kind = ""
        try:
            kind = jax.devices()[0].device_kind.lower()
        except Exception:
            pass
        cap = (64 if "v7" in kind else 128) * 1024 * 1024
    return cap * 3 // 4


def _padded_bytes_2d(shape, itemsize):
    return _round_up(shape[0], _SUBLANE) * _round_up(shape[1], _LANE) * itemsize


def _choose_batch_tile(B, elem_vmem_cost, elem_block_bytes, budget_bytes,
                       target_block_bytes=4 << 20, min_grid=8):
    """Batch tile (divisor of B) for the fused path, or None if nothing fits.

    Do NOT maximize the block: cap per-block size at a few MiB, require a grid
    of >= min_grid steps when possible (>= 4 per v7x TensorCore so DMA and
    compute overlap and the two cores load-balance), then take the largest tb.
    """
    divisors = [d for d in range(1, B + 1) if B % d == 0]
    fits = [d for d in divisors if d * elem_vmem_cost <= budget_bytes]
    if not fits:
        return None
    capped = ([d for d in fits if d * elem_block_bytes <= target_block_bytes]
              or [min(fits)])
    granular = [d for d in capped if B // d >= min_grid]
    return max(granular) if granular else min(capped)


def _choose_channel_tile(C, pad_hw, itemsize, budget_bytes,
                         target_block_bytes=4 << 20):
    """Channel tile for the split path: a multiple of 8 that divides C."""
    if C % _SUBLANE != 0:
        return C   # full-extent block keeps the layout rules satisfied
    cands = [tc for tc in range(_SUBLANE, C + 1, _SUBLANE) if C % tc == 0]
    good = [tc for tc in cands
            if (4 * tc * pad_hw * itemsize <= budget_bytes
                and tc * pad_hw * itemsize <= target_block_bytes)]
    return max(good) if good else _SUBLANE


# ----------------------------- pallas_call wrappers ---------------------------


def _se_fused(x3, w1, w2, *, tb, inv_hw, vmem_limit):
    B, C, HW = x3.shape
    Cr = w1.shape[1]
    itemsize = jnp.dtype(x3.dtype).itemsize
    w_bytes = (w1.size * jnp.dtype(w1.dtype).itemsize
               + w2.size * jnp.dtype(w2.dtype).itemsize)
    cost = pl.CostEstimate(
        flops=int(2 * B * C * HW + 4 * B * C * Cr),
        transcendentals=int(B * C),
        bytes_accessed=int(2 * B * C * HW * itemsize + w_bytes),
    )
    return pl.pallas_call(
        functools.partial(_se_fused_kernel, inv_hw=inv_hw),
        out_shape=jax.ShapeDtypeStruct((B, C, HW), x3.dtype),
        grid_spec=pltpu.PrefetchScalarGridSpec(
            num_scalar_prefetch=0,
            grid=(B // tb,),
            in_specs=[
                pl.BlockSpec((tb, C, HW), lambda b: (b, 0, 0)),
                pl.BlockSpec(w1.shape, lambda b: (0, 0)),
                pl.BlockSpec(w2.shape, lambda b: (0, 0)),
            ],
            out_specs=pl.BlockSpec((tb, C, HW), lambda b: (b, 0, 0)),
        ),
        compiler_params=pltpu.CompilerParams(
            dimension_semantics=("parallel",),
            vmem_limit_bytes=vmem_limit,
        ),
        cost_estimate=cost,
    )(x3, w1, w2)


def _se_split(x3, w1, w2, *, tc, inv_hw, vmem_limit):
    """Fallback for feature maps too large to hold (C, HW) per batch element:
    pool -> gate -> scale (reads x twice, writes once)."""
    B, C, HW = x3.shape
    Cr = w1.shape[1]
    itemsize = jnp.dtype(x3.dtype).itemsize

    # Pass 1: per-(batch, channel-tile) global average pool -> (B, C, 1) f32.
    pooled = pl.pallas_call(
        functools.partial(_pool_kernel, inv_hw=inv_hw),
        out_shape=jax.ShapeDtypeStruct((B, C, 1), jnp.float32),
        grid_spec=pltpu.PrefetchScalarGridSpec(
            num_scalar_prefetch=0,
            grid=(B, C // tc),
            in_specs=[pl.BlockSpec((1, tc, HW), lambda b, c: (b, c, 0))],
            out_specs=pl.BlockSpec((1, tc, 1), lambda b, c: (b, c, 0)),
        ),
        compiler_params=pltpu.CompilerParams(
            dimension_semantics=("parallel", "parallel"),
            vmem_limit_bytes=vmem_limit,
        ),
        cost_estimate=pl.CostEstimate(
            flops=int(B * C * HW), transcendentals=0,
            bytes_accessed=int(B * C * HW * itemsize + B * C * 4)),
    )(x3)

    # Pass 2: tiny excitation, tiled over batch (lane padding of the trailing
    # 1 makes a (tbg, C, 1) block cost tbg * roundup(C,8) * 128 * 4 in VMEM).
    per_gate_elem = _round_up(C, _SUBLANE) * _LANE * 4
    tbg = max([d for d in range(1, B + 1)
               if B % d == 0 and 4 * d * per_gate_elem <= (16 << 20)] or [1])
    gate = pl.pallas_call(
        _gate_kernel,
        out_shape=jax.ShapeDtypeStruct((B, C, 1), jnp.float32),
        grid_spec=pltpu.PrefetchScalarGridSpec(
            num_scalar_prefetch=0,
            grid=(B // tbg,),
            in_specs=[
                pl.BlockSpec((tbg, C, 1), lambda i: (i, 0, 0)),
                pl.BlockSpec(w1.shape, lambda i: (0, 0)),
                pl.BlockSpec(w2.shape, lambda i: (0, 0)),
            ],
            out_specs=pl.BlockSpec((tbg, C, 1), lambda i: (i, 0, 0)),
        ),
        compiler_params=pltpu.CompilerParams(
            dimension_semantics=("parallel",),
            vmem_limit_bytes=vmem_limit,
        ),
        cost_estimate=pl.CostEstimate(
            flops=int(4 * B * C * Cr), transcendentals=int(B * C),
            bytes_accessed=int(2 * B * C * 4)),
    )(pooled, w1, w2)

    # Pass 3: elementwise scale, streaming x a second time.
    return pl.pallas_call(
        _scale_kernel,
        out_shape=jax.ShapeDtypeStruct((B, C, HW), x3.dtype),
        grid_spec=pltpu.PrefetchScalarGridSpec(
            num_scalar_prefetch=0,
            grid=(B, C // tc),
            in_specs=[
                pl.BlockSpec((1, tc, HW), lambda b, c: (b, c, 0)),
                pl.BlockSpec((1, tc, 1), lambda b, c: (b, c, 0)),
            ],
            out_specs=pl.BlockSpec((1, tc, HW), lambda b, c: (b, c, 0)),
        ),
        compiler_params=pltpu.CompilerParams(
            dimension_semantics=("parallel", "parallel"),
            vmem_limit_bytes=vmem_limit,
        ),
        cost_estimate=pl.CostEstimate(
            flops=int(B * C * HW), transcendentals=0,
            bytes_accessed=int(2 * B * C * HW * itemsize + B * C * 4)),
    )(x3, gate)


def _se_layer(x, w1, w2, *, force_split=False):
    """x: (B, C, H, W); w1: (C, C//r); w2: (C//r, C). Returns (B, C, H, W)."""
    B, C, H, W = x.shape
    HW = H * W
    inv_hw = 1.0 / HW
    itemsize = jnp.dtype(x.dtype).itemsize

    # NCHW consumed directly as (B, C, HW): free, contiguous reshape (no
    # NHWC transposes, which would add two full HBM passes to a 2-pass op).
    x3 = x.reshape(B, C, HW)

    vmem_limit = _vmem_limit_bytes()

    # Padding-aware VMEM accounting: C pads to sublane multiples, HW to lane
    # multiples; sub-f32 inputs may get an f32 copy materialized by the
    # f32-accumulating reduce; weights may be double-buffered; keep headroom
    # for compiler-internal scratch and small f32 intermediates.
    pad_c = _round_up(C, _SUBLANE)
    pad_hw = _round_up(HW, _LANE)
    elem_block = pad_c * pad_hw * itemsize
    elem_f32_copy = pad_c * pad_hw * 4 if itemsize < 4 else 0
    elem_cost = 4 * elem_block + elem_f32_copy      # double-buffered in + out
    w_vmem = 2 * (_padded_bytes_2d(w1.shape, jnp.dtype(w1.dtype).itemsize)
                  + _padded_bytes_2d(w2.shape, jnp.dtype(w2.dtype).itemsize))
    budget = max(vmem_limit - w_vmem - (3 << 20), 0)

    tb = _choose_batch_tile(B, elem_cost, elem_block, budget)
    if force_split or tb is None:
        tc = _choose_channel_tile(C, pad_hw, itemsize, budget)
        out3 = _se_split(x3, w1, w2, tc=tc, inv_hw=inv_hw,
                         vmem_limit=vmem_limit)
    else:
        out3 = _se_fused(x3, w1, w2, tb=tb, inv_hw=inv_hw,
                         vmem_limit=vmem_limit)
    return out3.reshape(B, C, H, W)


se_layer = jax.jit(_se_layer, static_argnames=("force_split",))


def se_layer_ref(x, w1, w2):
    """Pure-JAX reference mirroring the PyTorch forward."""
    y = jnp.mean(x, axis=(2, 3))               # adaptive avg pool -> (B, C)
    y = jnp.maximum(y @ w1, 0.0)               # Linear(C, C//r, bias=False) + ReLU
    y = jax.nn.sigmoid(y @ w2)                 # Linear(C//r, C, bias=False) + Sigmoid
    return x * y[:, :, None, None]             # expand_as + elementwise scale


if __name__ == "__main__":
    B, C, H, W = 4, 32, 8, 8
    reduction = 16
    Cr = C // reduction

    key = jax.random.PRNGKey(0)
    kx, k1, k2 = jax.random.split(key, 3)

    x = jax.random.normal(kx, (B, C, H, W), dtype=jnp.float32)
    # Deterministic synthetic weights: Linear(C, Cr) then Linear(Cr, C), no bias.
    w1 = jax.random.normal(k1, (C, Cr), dtype=jnp.float32) / jnp.sqrt(C)
    w2 = jax.random.normal(k2, (Cr, C), dtype=jnp.float32) / jnp.sqrt(Cr)

    ref = se_layer_ref(x, w1, w2)

    # Main fused path.
    out = jax.block_until_ready(se_layer(x, w1, w2))
    assert out.shape == (B, C, H, W)
    assert jnp.allclose(out, ref, atol=1e-5, rtol=1e-5)

    # Exercise the large-feature-map fallback (pool -> gate -> scale) too.
    out_split = jax.block_until_ready(se_layer(x, w1, w2, force_split=True))
    assert jnp.allclose(out_split, ref, atol=1e-5, rtol=1e-5)

    print("KERNEL_OK")
</pallas_src>

<mosaic_0001>
module attributes {stable_mosaic.version = 11 : i64} {
  func.func @_se_fused_kernel(%arg0: i32, %arg1: memref<1x32x64xf32, #tpu.memory_space<vmem>>, %arg2: memref<32x2xf32, #tpu.memory_space<vmem>>, %arg3: memref<2x32xf32, #tpu.memory_space<vmem>>, %arg4: memref<1x32x64xf32, #tpu.memory_space<vmem>>) attributes {dimension_semantics = [#tpu.dimension_semantics<parallel>], iteration_bounds = array<i64: 4>, scalar_prefetch = 0 : i64, scratch_operands = 0 : i64, tpu.core_type = #tpu.core_type<tc>, window_params = [{transform_indices = @transform_0, window_bounds = array<i64: 1, 32, 64>}, {pipeline_mode = #tpu.pipeline_mode<synchronous>, transform_indices = @transform_1, window_bounds = array<i64: 32, 2>}, {pipeline_mode = #tpu.pipeline_mode<synchronous>, transform_indices = @transform_2, window_bounds = array<i64: 2, 32>}, {transform_indices = @transform_3, window_bounds = array<i64: 1, 32, 64>}]} {
    %c0 = arith.constant 0 : index
    %c0_0 = arith.constant 0 : index
    %c0_1 = arith.constant 0 : index
    %0 = vector.load %arg1[%c0, %c0_0, %c0_1] : memref<1x32x64xf32, #tpu.memory_space<vmem>>, vector<1x32x64xf32>
    %cst = arith.constant dense<0.000000e+00> : vector<1x32xf32>
    %1 = vector.multi_reduction <add>, %0, %cst [2] : vector<1x32x64xf32> to vector<1x32xf32>
    %cst_2 = arith.constant 1.562500e-02 : f32
    %2 = vector.broadcast %cst_2 : f32 to vector<1x32xf32>
    %3 = arith.mulf %1, %2 : vector<1x32xf32>
    %c0_3 = arith.constant 0 : index
    %c0_4 = arith.constant 0 : index
    %4 = vector.load %arg2[%c0_3, %c0_4] : memref<32x2xf32, #tpu.memory_space<vmem>>, vector<32x2xf32>
    %c0_5 = arith.constant 0 : index
    %c0_6 = arith.constant 0 : index
    %5 = vector.load %arg3[%c0_5, %c0_6] : memref<2x32xf32, #tpu.memory_space<vmem>>, vector<2x32xf32>
    %cst_7 = arith.constant dense<0.000000e+00> : vector<1x2xf32>
    %6 = tpu.matmul %3, %4, %cst_7 {dimension_numbers = #tpu.dot_dimension_numbers<[1], [0], [0], [1], [0, 0, 1, 1], [], []>} : vector<1x32xf32>, vector<32x2xf32>, vector<1x2xf32> -> vector<1x2xf32>
    %cst_8 = arith.constant 0.000000e+00 : f32
    %7 = vector.broadcast %cst_8 : f32 to vector<1x2xf32>
    %8 = arith.maximumf %6, %7 : vector<1x2xf32>
    %cst_9 = arith.constant dense<0.000000e+00> : vector<1x32xf32>
    %9 = tpu.matmul %8, %5, %cst_9 {dimension_numbers = #tpu.dot_dimension_numbers<[1], [0], [0], [1], [0, 0, 1, 1], [], []>} : vector<1x2xf32>, vector<2x32xf32>, vector<1x32xf32> -> vector<1x32xf32>
    %10 = arith.negf %9 : vector<1x32xf32>
    %11 = math.exp %10 : vector<1x32xf32>
    %cst_10 = arith.constant 1.000000e+00 : f32
    %12 = vector.broadcast %cst_10 : f32 to vector<1x32xf32>
    %13 = arith.addf %12, %11 : vector<1x32xf32>
    %14 = arith.divf %12, %13 : vector<1x32xf32>
    %15 = vector.shape_cast %14 : vector<1x32xf32> to vector<1x32x1xf32>
    %16 = vector.broadcast %15 : vector<1x32x1xf32> to vector<1x32x64xf32>
    %17 = arith.mulf %0, %16 : vector<1x32x64xf32>
    %c0_11 = arith.constant 0 : index
    %c0_12 = arith.constant 0 : index
    %c0_13 = arith.constant 0 : index
    %18 = vector.load %arg4[%c0_11, %c0_12, %c0_13] : memref<1x32x64xf32, #tpu.memory_space<vmem>>, vector<1x32x64xf32>
    tpu.vector_store %arg4[%c0_11, %c0_12, %c0_13], %17 {strides = array<i32>} : memref<1x32x64xf32, #tpu.memory_space<vmem>>, vector<1x32x64xf32>,
    return
  }
  func.func @transform_0(%arg0: i32) -> (i32, i32, i32) {
    %c0_i32 = arith.constant 0 : i32
    %c0_i32_0 = arith.constant 0 : i32
    %c0_i32_1 = arith.constant 0 : i32
    return %arg0, %c0_i32, %c0_i32_0 : i32, i32, i32
  }
  func.func @transform_1(%arg0: i32) -> (i32, i32) {
    %c0_i32 = arith.constant 0 : i32
    %c0_i32_0 = arith.constant 0 : i32
    %c0_i32_1 = arith.constant 0 : i32
    return %c0_i32, %c0_i32_0 : i32, i32
  }
  func.func @transform_2(%arg0: i32) -> (i32, i32) {
    %c0_i32 = arith.constant 0 : i32
    %c0_i32_0 = arith.constant 0 : i32
    %c0_i32_1 = arith.constant 0 : i32
    return %c0_i32, %c0_i32_0 : i32, i32
  }
  func.func @transform_3(%arg0: i32) -> (i32, i32, i32) {
    %c0_i32 = arith.constant 0 : i32
    %c0_i32_0 = arith.constant 0 : i32
    %c0_i32_1 = arith.constant 0 : i32
    return %arg0, %c0_i32, %c0_i32_0 : i32, i32, i32
  }
}

</mosaic_0001>

<llo_original>
// kernel: _se_layer.1
$region0: #{_se_layer.1}
  #allocation0 [shape = 'u32[]', space=smem, size = 0x4, offset = 0x4, fixed_abs, tag = 'smem constant byte address 0x4 - core index']
  #allocation1 [shape = 'u32[144,128]{1,0:T(1,128)}', space=vmem, size = 0x12000, scoped, tag = 'internal scratch']
  %s0 = inlined_call_operand.vmem [shape: f32[4,32,64], index: 0, kind: input, shape index: {}]
  %s1 = inlined_call_operand.vmem [shape: f32[32,2], index: 1, kind: input, shape index: {}]
  %s2 = inlined_call_operand.vmem [shape: f32[2,32], index: 2, kind: input, shape index: {}]
  %s3 = inlined_call_operand.vmem [shape: f32[4,32,64], index: 3, kind: output, shape index: {}]
  %s4 = sld [smem:[#allocation0]]
  $region45: #{_se_layer.1} parent=0
    _
  %s6 = ssub.s32 1, %s4
  %s7 = scalar_select 0, %s6, %s4
  loop: start=0, step=1, limit=6
  $region2: #{_se_layer.1} parent=0 // loop_pre_header
    _
  $region3: #{_se_layer.1} parent=0 // loop_header
    %s9 = sphi 0, %s13
    %p10 = scmp.ge.s32.totalorder %s9, 6
    %s19 = sphi 0, %s21
    %s22 = sphi 0, %s19
    %s23 = sphi 0, %s22
    %s39 = sphi 0, %s23
    %s43 = sphi 0, %s43
    %s45 = sphi 0, %s43
    %s46 = sphi 0, %s45
    %s60 = sphi 0, %s46
    %s64 = sphi 0, %s64
    %s66 = sphi 0, %s64
    %s67 = sphi 0, %s66
    %s81 = sphi 0, %s67
    %s87 = sphi 0, %s89
    %s90 = sphi 0, %s87
    %s91 = sphi 0, %s90
    %s107 = sphi 0, %s91
  $region4: #{_se_layer.1} parent=0 // loop_header_branch
    %12 = sbr.rel (%p10) target = $region8
  $region5: #{_se_layer.1} parent=0 // loop_body
    %s14 = ssub.s32 %s9, 1
    %s15 = ssub.s32 %s9, 2
    %s16 = sadd.s32 %s9, 1
    %s17 = ssub.s32 %s9, %s16
    %p18 = scmp.eq.s32.totalorder %s17, 0
    %s20 = sadd.s32 %s19, 1
    %s21 = scalar_select %p18, %s19, %s20
    %p24 = pneg %p18
    %p25 = scmp.eq.s32.totalorder %s9, 3
    %p26 = por %p24, %p25
    %p27 = scmp.ne.s32.totalorder %s19, %s22
    %p28 = scmp.eq.s32.totalorder %s9, 0
    %p29 = por %p27, %p28
    %p30 = scmp.ne.s32.totalorder %s19, %s22
    %p31 = scmp.eq.s32.totalorder %s14, 3
    %p32 = por %p30, %p31
    %p33 = scmp.ne.s32.totalorder %s22, %s23
    %p34 = scmp.eq.s32.totalorder %s14, 0
    %p35 = por %p33, %p34
    %p36 = scmp.ne.s32.totalorder %s22, %s23
    %p37 = scmp.eq.s32.totalorder %s15, 3
    %p38 = por %p36, %p37
    %p40 = scmp.ne.s32.totalorder %s23, %s39
    %p41 = scmp.eq.s32.totalorder %s15, 0
    %p42 = por %p40, %p41
    %s44 = sadd.s32 %s43, 1
    %p47 = scmp.eq.s32.totalorder %s9, 3
    %p48 = scmp.ne.s32.totalorder %s43, %s45
    %p49 = scmp.eq.s32.totalorder %s9, 0
    %p50 = por %p48, %p49
    %p51 = scmp.ne.s32.totalorder %s43, %s45
    %p52 = scmp.eq.s32.totalorder %s14, 3
    %p53 = por %p51, %p52
    %p54 = scmp.ne.s32.totalorder %s45, %s46
    %p55 = scmp.eq.s32.totalorder %s14, 0
    %p56 = por %p54, %p55
    %p57 = scmp.ne.s32.totalorder %s45, %s46
    %p58 = scmp.eq.s32.totalorder %s15, 3
    %p59 = por %p57, %p58
    %p61 = scmp.ne.s32.totalorder %s46, %s60
    %p62 = scmp.eq.s32.totalorder %s15, 0
    %p63 = por %p61, %p62
    %s65 = sadd.s32 %s64, 1
    %p68 = scmp.eq.s32.totalorder %s9, 3
    %p69 = scmp.ne.s32.totalorder %s64, %s66
    %p70 = scmp.eq.s32.totalorder %s9, 0
    %p71 = por %p69, %p70
    %p72 = scmp.ne.s32.totalorder %s64, %s66
    %p73 = scmp.eq.s32.totalorder %s14, 3
    %p74 = por %p72, %p73
    %p75 = scmp.ne.s32.totalorder %s66, %s67
    %p76 = scmp.eq.s32.totalorder %s14, 0
    %p77 = por %p75, %p76
    %p78 = scmp.ne.s32.totalorder %s66, %s67
    %p79 = scmp.eq.s32.totalorder %s15, 3
    %p80 = por %p78, %p79
    %p82 = scmp.ne.s32.totalorder %s67, %s81
    %p83 = scmp.eq.s32.totalorder %s15, 0
    %p84 = por %p82, %p83
    %s85 = ssub.s32 %s9, %s16
    %p86 = scmp.eq.s32.totalorder %s85, 0
    %s88 = sadd.s32 %s87, 1
    %s89 = scalar_select %p86, %s87, %s88
    %p92 = pneg %p86
    %p93 = scmp.eq.s32.totalorder %s9, 3
    %p94 = por %p92, %p93
    %p95 = scmp.ne.s32.totalorder %s87, %s90
    %p96 = scmp.eq.s32.totalorder %s9, 0
    %p97 = por %p95, %p96
    %p98 = scmp.ne.s32.totalorder %s87, %s90
    %p99 = scmp.eq.s32.totalorder %s14, 3
    %p100 = por %p98, %p99
    %p101 = scmp.ne.s32.totalorder %s90, %s91
    %p102 = scmp.eq.s32.totalorder %s14, 0
    %p103 = por %p101, %p102
    %p104 = scmp.ne.s32.totalorder %s90, %s91
    %p105 = scmp.eq.s32.totalorder %s15, 3
    %p106 = por %p104, %p105
    %p108 = scmp.ne.s32.totalorder %s91, %s107
    %p109 = scmp.eq.s32.totalorder %s15, 0
    %p110 = por %p108, %p109
    %p111 = scmp.le.s32.totalorder 1, %s9
    %p112 = scmp.lt.s32.totalorder %s9, 5
    %p113 = pnand %p111, %p112
    %p114 = pneg %p113
    // Predicated region
    $region9: #{_se_layer.1} parent=5 // pred_check
      _
    $region10: #{_se_layer.1} parent=5 // pred_check_branch
      %116 = sbr.rel (%p113) target = $region12
    $region11: #{_se_layer.1} parent=5 // pred_region
      %s117 = ssub.s32 %s9, 1
      // Predicated region
      $region13: #{_se_layer.1} parent=11 // pred_check
        %p118 = pneg %p56
      $region14: #{_se_layer.1} parent=11 // pred_check_branch
        %120 = sbr.rel (%p118) target = $region16
      $region15: #{_se_layer.1} parent=11 // pred_region
        _
      $region16: #{_se_layer.1} parent=11 // pred_fallthru
        _
      // Predicated region
      $region17: #{_se_layer.1} parent=11 // pred_check
        %p121 = pneg %p77
      $region18: #{_se_layer.1} parent=11 // pred_check_branch
        %123 = sbr.rel (%p121) target = $region20
      $region19: #{_se_layer.1} parent=11 // pred_region
        _
      $region20: #{_se_layer.1} parent=11 // pred_fallthru
        _
    $region12: #{_se_layer.1} parent=5 // pred_fallthru
      _
    %p124 = scmp.lt.s32.totalorder %s9, 4
    // Predicated region
    $region21: #{_se_layer.1} parent=5 // pred_check
      %p125 = pneg %p124
    $region22: #{_se_layer.1} parent=5 // pred_check_branch
      %127 = sbr.rel (%p125) target = $region24
    $region23: #{_se_layer.1} parent=5 // pred_region
      // Predicated region
      $region25: #{_se_layer.1} parent=23 // pred_check
        %p128 = pneg %p29
      $region26: #{_se_layer.1} parent=23 // pred_check_branch
        %130 = sbr.rel (%p128) target = $region28
      $region27: #{_se_layer.1} parent=23 // pred_region
        %p131 = scmp.lt.s32.totalorder %s9, 3
        %s132 = scalar_select %p131, %s9, 3
        %s133 = smul.addr %s132, 4
        %s134 = smul.addr %s133, 8
        %s135 = scalar_lea.vmem %s0, %s134
      $region28: #{_se_layer.1} parent=23 // pred_fallthru
        _
    $region24: #{_se_layer.1} parent=5 // pred_fallthru
      _
    %p136 = scmp.le.s32.totalorder 1, %s9
    %p137 = scmp.lt.s32.totalorder %s9, 5
    %p138 = pnand %p136, %p137
    %p139 = pneg %p138
    // Predicated region
    $region29: #{_se_layer.1} parent=5 // pred_check
      _
    $region30: #{_se_layer.1} parent=5 // pred_check_branch
      %141 = sbr.rel (%p138) target = $region32
    $region31: #{_se_layer.1} parent=5 // pred_region
      %s142 = ssub.s32 %s9, 1
      %p143 = scmp.lt.s32.totalorder %s14, 3
      %s144 = scalar_select %p143, %s14, 3
      %s145 = smul.addr %s144, 4
      %s146 = smul.addr %s145, 8
      %s147 = scalar_lea.vmem %s0, %s146
      %p148 = pneg %p35
      %p149 = pneg %p32
      %p150 = pneg %p56
      %p151 = pneg %p53
      %p152 = pneg %p77
      %p153 = pneg %p74
      %p154 = pneg %p103
      %p155 = pneg %p100
      %p156 = scmp.lt.s32.totalorder %s14, 3
      %s157 = scalar_select %p156, %s14, 3
      %s158 = smul.addr %s157, 4
      %s159 = smul.addr %s158, 8
      %s160 = scalar_lea.vmem %s3, %s159
      %p161 = scmp.lt.s32.totalorder %s14, 3
      %s162 = scalar_select %p161, %s14, 3
      %s163 = smul.addr %s162, 4
      %s164 = smul.addr %s163, 8
      %s165 = scalar_lea.vmem %s0, %s164
      %p166 = scmp.lt.s32.totalorder %s14, 3
      %s167 = scalar_select %p166, %s14, 3
      %s168 = smul.addr %s167, 4
      %s169 = smul.addr %s168, 8
      %s170 = scalar_lea.vmem %s3, %s169
      %v171 = vld [vmem:[%s165] sm:$0xff]
      %v172 = vld [vmem:[%s165 + $0x8] sm:$0xff]
      %v173 = vld [vmem:[%s165 + $0x10] sm:$0xff]
      %v174 = vld [vmem:[%s165 + $0x18] sm:$0xff]
      %vm175 = vcmask 523264
      %v176 = vsel %vm175, %v171, 0.0
      %177 = vadd.xlane.f32.xlu0 %v176
      %v178 = vpop.xlane.xlu0 %177
      %v179 = vsel %vm175, %v172, 0.0
      %180 = vadd.xlane.f32.xlu0 %v179
      %v181 = vpop.xlane.xlu0 %180
      %v182 = vsel %vm175, %v173, 0.0
      %183 = vadd.xlane.f32.xlu0 %v182
      %v184 = vpop.xlane.xlu0 %183
      %v185 = vsel %vm175, %v174, 0.0
      %186 = vadd.xlane.f32.xlu0 %v185
      %v187 = vpop.xlane.xlu0 %186
      %v188 = vmul.f32 %v178, 0.015625
      %v189 = vmul.f32 %v181, 0.015625
      %v190 = vmul.f32 %v184, 0.015625
      %v191 = vmul.f32 %v187, 0.015625
      %v192 = vld [vmem:[%s1] sm:$0xff]
      %v193 = vld [vmem:[%s1 + $0x8] sm:$0xff]
      %v194 = vld [vmem:[%s1 + $0x10] sm:$0xff]
      %v195 = vld [vmem:[%s1 + $0x18] sm:$0xff]
      %v196 = vld [vmem:[%s2] sm:$0x3]
      %v201 = vlaneseq
      %v202 = vand.u32 %v201, 127
      %v203 = vlaneseq
      %v204 = vshrl.u32 %v203, 7
      %v205 = vsub.s32 %v202, %v204
      %v206 = vrot.slane %v188, %v205
      %v207 = vadd.s32 %v202, 4294967288
      %v208 = vlaneseq
      %v209 = vshrl.u32 %v208, 7
      %v210 = vsub.s32 %v207, %v209
      %v211 = vrot.slane %v189, %v210
      %vm212 = vcmask 130112
      %v213 = vsel %vm212, %v211, %v206
      %v214 = vadd.s32 %v202, 4294967280
      %v215 = vlaneseq
      %v216 = vshrl.u32 %v215, 7
      %v217 = vsub.s32 %v214, %v216
      %v218 = vrot.slane %v190, %v217
      %vm219 = vcmask 195712
      %v220 = vsel %vm219, %v218, %v213
      %v221 = vadd.s32 %v202, 4294967272
      %v222 = vlaneseq
      %v223 = vshrl.u32 %v222, 7
      %v224 = vsub.s32 %v221, %v223
      %v225 = vrot.slane %v191, %v224
      %vm226 = vcmask 261312
      %v227 = vsel %vm226, %v225, %v220
      %vm228 = vcmask 261120
      %v229 = vsel %vm228, %v227, 0
      %231 = vmatprep.subr.mxu0 0.0
      %232 = vmatpush1.msra.mxu0 0.0
      %233 = vmatprep.subr.mxu0 0.0
      %234 = vmatpush1.msra.mxu0 0.0
      %235 = vmatprep.subr.mxu0 0.0
      %236 = vmatpush1.msra.mxu0 0.0
      %237 = vmatprep.subr.mxu0 0.0
      %238 = vmatpush1.msra.mxu0 0.0
      %239 = vmatprep.subr.mxu0 0.0
      %240 = vmatpush1.msra.mxu0 0.0
      %241 = vmatprep.subr.mxu0 0.0
      %242 = vmatpush1.msra.mxu0 0.0
      %243 = vmatprep.subr.mxu0 0.0
      %244 = vmatpush1.msra.mxu0 0.0
      %245 = vmatprep.subr.mxu0 0.0
      %246 = vmatpush1.msra.mxu0 0.0
      %247 = vmatprep.subr.mxu0 0.0
      %248 = vmatpush1.msra.mxu0 0.0
      %249 = vmatprep.subr.mxu0 0.0
      %250 = vmatpush1.msra.mxu0 0.0
      %251 = vmatprep.subr.mxu0 0.0
      %252 = vmatpush1.msra.mxu0 0.0
      %253 = vmatprep.subr.mxu0 0.0
      %254 = vmatpush1.msra.mxu0 0.0
      %255 = vmatprep.subr.mxu0 0.0
      %256 = vmatpush1.msra.mxu0 %v195
      %257 = vmatprep.subr.mxu0 0.0
      %258 = vmatpush1.msra.mxu0 %v194
      %259 = vmatprep.subr.mxu0 0.0
      %260 = vmatpush1.msra.mxu0 %v193
      %261 = vmatprep.subr.mxu0 0.0
      %262 = vmatpush1.msra.mxu0 %v192
      %263 = vmatprep.subr.mxu0 0.0
      %264 = vmatpush2.msra.mxu0 0.0
      %265 = vmatprep.subr.mxu0 0.0
      %266 = vmatpush2.msra.mxu0 0.0
      %267 = vmatprep.subr.mxu0 0.0
      %268 = vmatpush2.msra.mxu0 0.0
      %269 = vmatprep.subr.mxu0 0.0
      %270 = vmatpush2.msra.mxu0 0.0
      %271 = vmatprep.subr.mxu0 0.0
      %272 = vmatpush2.msra.mxu0 0.0
      %273 = vmatprep.subr.mxu0 0.0
      %274 = vmatpush2.msra.mxu0 0.0
      %275 = vmatprep.subr.mxu0 0.0
      %276 = vmatpush2.msra.mxu0 0.0
      %277 = vmatprep.subr.mxu0 0.0
      %278 = vmatpush2.msra.mxu0 0.0
      %279 = vmatprep.subr.mxu0 0.0
      %280 = vmatpush2.msra.mxu0 0.0
      %281 = vmatprep.subr.mxu0 0.0
      %282 = vmatpush2.msra.mxu0 0.0
      %283 = vmatprep.subr.mxu0 0.0
      %284 = vmatpush2.msra.mxu0 0.0
      %285 = vmatprep.subr.mxu0 0.0
      %286 = vmatpush2.msra.mxu0 0.0
      %287 = vmatprep.subr.mxu0 0.0
      %288 = vmatpush2.msra.mxu0 0.0
      %289 = vmatprep.subr.mxu0 0.0
      %290 = vmatpush2.msra.mxu0 0.0
      %291 = vmatprep.subr.mxu0 0.0
      %292 = vmatpush2.msra.mxu0 0.0
      %293 = vmatprep.subr.mxu0 0.0
      %294 = vmatpush2.msra.mxu0 0.0
      %295 = vmatprep.mubr.f32.mxu0 0.0
      %296 = vmatmul.mubr.f32.gmra.mxu0 %v229
      %v297 = vpop.f32.mrf.mxu0
      %v298 = vadd.f32 0.0, %v297
      %v299 = vpop.f32.mrf.mxu0
      %300 = vdwg.mxu0
      %v301 = vmax.f32 %v298, 0.0
      %vm302 = vcmask 15360
      %v304 = vsel %vm302, %v301, 0
      %vm306 = vcmask 1041408
      %v308 = vsel %vm306, %v196, 0
      %310 = vmatprep.subr.mxu0 0.0
      %311 = vmatpush1.msra.mxu0 0.0
      %312 = vmatprep.subr.mxu0 0.0
      %313 = vmatpush1.msra.mxu0 0.0
      %314 = vmatprep.subr.mxu0 0.0
      %315 = vmatpush1.msra.mxu0 0.0
      %316 = vmatprep.subr.mxu0 0.0
      %317 = vmatpush1.msra.mxu0 0.0
      %318 = vmatprep.subr.mxu0 0.0
      %319 = vmatpush1.msra.mxu0 0.0
      %320 = vmatprep.subr.mxu0 0.0
      %321 = vmatpush1.msra.mxu0 0.0
      %322 = vmatprep.subr.mxu0 0.0
      %323 = vmatpush1.msra.mxu0 0.0
      %324 = vmatprep.subr.mxu0 0.0
      %325 = vmatpush1.msra.mxu0 0.0
      %326 = vmatprep.subr.mxu0 0.0
      %327 = vmatpush1.msra.mxu0 0.0
      %328 = vmatprep.subr.mxu0 0.0
      %329 = vmatpush1.msra.mxu0 0.0
      %330 = vmatprep.subr.mxu0 0.0
      %331 = vmatpush1.msra.mxu0 0.0
      %332 = vmatprep.subr.mxu0 0.0
      %333 = vmatpush1.msra.mxu0 0.0
      %334 = vmatprep.subr.mxu0 0.0
      %335 = vmatpush1.msra.mxu0 0.0
      %336 = vmatprep.subr.mxu0 0.0
      %337 = vmatpush1.msra.mxu0 0.0
      %338 = vmatprep.subr.mxu0 0.0
      %339 = vmatpush1.msra.mxu0 0.0
      %340 = vmatprep.subr.mxu0 0.0
      %341 = vmatpush1.msra.mxu0 %v308
      %342 = vmatprep.subr.mxu0 0.0
      %343 = vmatpush2.msra.mxu0 0.0
      %344 = vmatprep.subr.mxu0 0.0
      %345 = vmatpush2.msra.mxu0 0.0
      %346 = vmatprep.subr.mxu0 0.0
      %347 = vmatpush2.msra.mxu0 0.0
      %348 = vmatprep.subr.mxu0 0.0
      %349 = vmatpush2.msra.mxu0 0.0
      %350 = vmatprep.subr.mxu0 0.0
      %351 = vmatpush2.msra.mxu0 0.0
      %352 = vmatprep.subr.mxu0 0.0
      %353 = vmatpush2.msra.mxu0 0.0
      %354 = vmatprep.subr.mxu0 0.0
      %355 = vmatpush2.msra.mxu0 0.0
      %356 = vmatprep.subr.mxu0 0.0
      %357 = vmatpush2.msra.mxu0 0.0
      %358 = vmatprep.subr.mxu0 0.0
      %359 = vmatpush2.msra.mxu0 0.0
      %360 = vmatprep.subr.mxu0 0.0
      %361 = vmatpush2.msra.mxu0 0.0
      %362 = vmatprep.subr.mxu0 0.0
      %363 = vmatpush2.msra.mxu0 0.0
      %364 = vmatprep.subr.mxu0 0.0
      %365 = vmatpush2.msra.mxu0 0.0
      %366 = vmatprep.subr.mxu0 0.0
      %367 = vmatpush2.msra.mxu0 0.0
      %368 = vmatprep.subr.mxu0 0.0
      %369 = vmatpush2.msra.mxu0 0.0
      %370 = vmatprep.subr.mxu0 0.0
      %371 = vmatpush2.msra.mxu0 0.0
      %372 = vmatprep.subr.mxu0 0.0
      %373 = vmatpush2.msra.mxu0 0.0
      %374 = vmatprep.mubr.f32.mxu0 0.0
      %375 = vmatmul.mubr.f32.gmra.mxu0 %v304
      %v376 = vpop.f32.mrf.mxu0
      %v377 = vadd.f32 0.0, %v376
      %v378 = vpop.f32.mrf.mxu0
      %379 = vdwg.mxu0
      %v380 = vxor.u32 %v377, 2147483648
      %v381 = vmul.f32 %v380, 1.442695
      %v382 = vpow.pop %v381
      %v383 = vadd.f32 %v382, 1.0
      %v384 = vrcp.pop %v383
      %v385 = vmul.f32 1.0, %v384
      %v386 = vlaneseq
      %v387 = vshrl.u32 %v386, 7
      %v388 = vsub.s32 0, %v387
      %v389 = vrot.slane %v385, %v388
      %391 = vbcast.lane.b32.xlu0 %v389, 256
      %v392 = vpop.permute.xlu0 %391
      %s394 = sor.u32 256, 8
      %395 = vbcast.lane.b32.xlu0 %v389, %s394
      %v396 = vpop.permute.xlu0 %395
      %s398 = sor.u32 256, 16
      %399 = vbcast.lane.b32.xlu0 %v389, %s398
      %v400 = vpop.permute.xlu0 %399
      %s402 = sor.u32 256, 24
      %403 = vbcast.lane.b32.xlu0 %v389, %s402
      %v404 = vpop.permute.xlu0 %403
      %v405 = vmul.f32 %v171, %v392
      %v406 = vmul.f32 %v172, %v396
      %v407 = vmul.f32 %v173, %v400
      %v408 = vmul.f32 %v174, %v404
      %409 = vst.msk [vmem:[%s170] sm:$0xff] %vm175, %v405
      %410 = vst.msk [vmem:[%s170 + $0x8] sm:$0xff] %vm175, %v406
      %411 = vst.msk [vmem:[%s170 + $0x10] sm:$0xff] %vm175, %v407
      %412 = vst.msk [vmem:[%s170 + $0x18] sm:$0xff] %vm175, %v408
      %p413 = scmp.lt.s32.totalorder %s14, 3
      %s414 = scalar_select %p413, %s14, 3
      %s415 = smul.addr %s414, 4
      %s416 = smul.addr %s415, 8
      %s417 = scalar_lea.vmem %s3, %s416
      // Predicated region
      $region33: #{_se_layer.1} parent=31 // pred_check
        %p418 = pneg %p100
      $region34: #{_se_layer.1} parent=31 // pred_check_branch
        %420 = sbr.rel (%p418) target = $region36
      $region35: #{_se_layer.1} parent=31 // pred_region
        _
      $region36: #{_se_layer.1} parent=31 // pred_fallthru
        _
    $region32: #{_se_layer.1} parent=5 // pred_fallthru
      _
    %p421 = scmp.le.s32.totalorder 2, %s9
    // Predicated region
    $region37: #{_se_layer.1} parent=5 // pred_check
      %p422 = pneg %p421
    $region38: #{_se_layer.1} parent=5 // pred_check_branch
      %424 = sbr.rel (%p422) target = $region40
    $region39: #{_se_layer.1} parent=5 // pred_region
      %s425 = ssub.s32 %s9, 2
      // Predicated region
      $region41: #{_se_layer.1} parent=39 // pred_check
        %p426 = pneg %p106
      $region42: #{_se_layer.1} parent=39 // pred_check_branch
        %428 = sbr.rel (%p426) target = $region44
      $region43: #{_se_layer.1} parent=39 // pred_region
        %p429 = scmp.lt.s32.totalorder %s15, 3
        %s430 = scalar_select %p429, %s15, 3
        %s431 = smul.addr %s430, 4
        %s432 = smul.addr %s431, 8
        %s433 = scalar_lea.vmem %s3, %s432
      $region44: #{_se_layer.1} parent=39 // pred_fallthru
        _
    $region40: #{_se_layer.1} parent=5 // pred_fallthru
      _
  $region6: #{_se_layer.1} parent=0 // loop_footer
    %s13 = sadd.s32 1, %s9
  $region7: #{_se_layer.1} parent=0 // loop_footer_branch
    %8 = sbr.rel target = $region3
  $region8: #{_se_layer.1} parent=0 // loop_exit
    _

</llo_original>
